<compile_context>
chip_gen: v6e
topology: v6e:2x2x1
jax: 0.10.0
libtpu: 0.0.40
codegen_flags: <defaults>
</compile_context>

<pallas_src>
import functools
import math

import jax
import jax.numpy as jnp
from jax.experimental import pallas as pl
from jax.experimental.pallas import tpu as pltpu

_LANE = 128


def _round_up(x, m):
    return ((x + m - 1) // m) * m


def _round_down(x, m):
    return (x // m) * m


def _sublane(dtype):
    """dtype-aware sublane alignment: f32 -> 8, bf16 -> 16, int8/fp8 -> 32."""
    return 8 * max(1, 4 // jnp.dtype(dtype).itemsize)


def _tpu_chip_info():
    """Returns (per-core VMEM capacity bytes, TPU generation int).

    Robust fallbacks (128 MiB / gen 6) if the query is unavailable.
    """
    vmem = 128 << 20
    gen = 6
    try:
        info = pltpu.get_tpu_info()
        cap = getattr(info, "vmem_capacity_bytes", None)
        if cap:
            vmem = int(cap)
    except Exception:
        pass
    try:
        kind = jax.devices()[0].device_kind.lower()
        for g in (7, 6, 5, 4, 3):
            if (f"v{g}" in kind) or (f"tpu{g}" in kind):
                gen = g
                break
    except Exception:
        pass
    return vmem, gen


def prepare_mlp_weights(weights, in_dim, compute_dtype=jnp.bfloat16):
    """Pad feature dims to 128-lane multiples and cast to compute_dtype ONCE.

    Do this at model-build time (not per forward call) so each forward avoids
    an extra full-weight HBM round trip.

    weights: list of [in_i, out_i] matrices (already transposed vs. PyTorch's
             nn.Linear which stores [out, in]).
    """
    prev_p = _round_up(in_dim, _LANE)
    padded = []
    for w in weights:
        i_d, o_d = w.shape
        o_p = _round_up(o_d, _LANE)
        wp = jnp.zeros((prev_p, o_p), compute_dtype).at[:i_d, :o_d].set(
            w.astype(compute_dtype))
        padded.append(wp)
        prev_p = o_p
    return padded


# --------------------------------------------------------------------------
# Fused path: all (padded, bf16) weights resident in VMEM, batch-tiled grid.
# --------------------------------------------------------------------------
def _mlp_fused_kernel(x_ref, *refs, activations, compute_dtype,
                      relu_in_compute):
    """Chain of (matmul -> optional ReLU) entirely in VMEM.

    refs = (w0_ref, ..., o_ref); activations[i] in {"relu", None}.
    Every dot accumulates in f32 on the MXU via preferred_element_type.
    On v6e/v7x (bf16 VALU) ReLU is applied after the downcast (same numerics,
    half the vregs); on v5e ReLU stays on the f32 accumulator.
    """
    w_refs = refs[:-1]
    o_ref = refs[-1]
    n_layers = len(w_refs)

    h = x_ref[...]  # already compute_dtype; no per-step up-cast
    for idx, (w_ref, act) in enumerate(zip(w_refs, activations)):
        acc = jnp.dot(h, w_ref[...], preferred_element_type=jnp.float32)
        if idx == n_layers - 1:
            if act == "relu":
                acc = jnp.maximum(acc, 0.0)
            h = acc.astype(o_ref.dtype)
        else:
            if act == "relu":
                if relu_in_compute:
                    h = jnp.maximum(acc.astype(compute_dtype), 0)
                else:
                    h = jnp.maximum(acc, 0.0).astype(compute_dtype)
            else:
                h = acc.astype(compute_dtype)
    o_ref[...] = h


# --------------------------------------------------------------------------
# Fallback path: per-layer K/N-tiled matmul (weights streamed, not resident).
# --------------------------------------------------------------------------
def _linear_tiled_kernel(x_ref, w_ref, o_ref, acc_ref, *, activation):
    @pl.when(pl.program_id(2) == 0)
    def _():
        acc_ref[...] = jnp.zeros_like(acc_ref)

    acc_ref[...] += jnp.dot(x_ref[...], w_ref[...],
                            preferred_element_type=jnp.float32)

    @pl.when(pl.program_id(2) == pl.num_programs(2) - 1)
    def _():
        acc = acc_ref[...]
        if activation == "relu":
            acc = jnp.maximum(acc, 0.0)
        o_ref[...] = acc.astype(o_ref.dtype)


def _pick_div_tile(dim, prefer=512):
    for t in (prefer, 256, 128):
        if dim % t == 0:
            return t
    return dim  # dim is always a multiple of 128 here, so unreachable


def _tiled_linear(x, w, activation, out_dtype, *, tm, vmem_limit):
    M, K = x.shape
    _, N = w.shape
    tn = _pick_div_tile(N)
    tk = _pick_div_tile(K)
    tm = min(tm, M)
    grid = (M // tm, N // tn, K // tk)
    return pl.pallas_call(
        functools.partial(_linear_tiled_kernel, activation=activation),
        out_shape=jax.ShapeDtypeStruct((M, N), out_dtype),
        grid=grid,
        in_specs=[pl.BlockSpec((tm, tk), lambda i, j, k: (i, k)),
                  pl.BlockSpec((tk, tn), lambda i, j, k: (k, j))],
        out_specs=pl.BlockSpec((tm, tn), lambda i, j, k: (i, j)),
        scratch_shapes=[pltpu.VMEM((tm, tn), jnp.float32)],
        compiler_params=pltpu.CompilerParams(
            dimension_semantics=("parallel", "parallel", "arbitrary"),
            vmem_limit_bytes=vmem_limit),
    )(x, w)


# --------------------------------------------------------------------------
# Public wrapper
# --------------------------------------------------------------------------
def mlp_forward(x, padded_weights, activations, out_dim, *,
                compute_dtype=jnp.bfloat16, out_dtype=None, batch_tile=None):
    """Run the MLP forward pass.

    x              : [B, inChNo]
    padded_weights : output of prepare_mlp_weights (lane-padded, compute_dtype)
    activations    : per-layer tag ("relu" or None), same length as weights
    out_dim        : logical number of output features (pre-padding)
    out_dtype      : output dtype; pass compute_dtype (bf16) to halve output
                     writeback traffic when the caller tolerates it.
    """
    B, in_dim = x.shape
    out_dtype = x.dtype if out_dtype is None else out_dtype
    itemsize = jnp.dtype(compute_dtype).itemsize
    out_itemsize = jnp.dtype(out_dtype).itemsize
    in_p = padded_weights[0].shape[0]
    out_p = padded_weights[-1].shape[1]

    vmem_cap, gen = _tpu_chip_info()
    usable_vmem = max(32 << 20, int(0.8 * vmem_cap))  # headroom for scratch
    align = _sublane(compute_dtype)
    relu_in_compute = gen >= 6  # bf16 VALU on v6e/v7x

    # Single-buffered resident weights (pipeline_mode=Buffered(1)) -> 1x bytes.
    weight_bytes = sum(int(w.size) for w in padded_weights) * itemsize
    widest = max([in_p, out_p] + [w.shape[1] for w in padded_weights])
    # Per-batch-row VMEM of the fused path: double-buffered x/out tiles plus
    # f32-accumulator / intermediate headroom.
    per_row = (2 * in_p * itemsize + 2 * out_p * out_itemsize
               + 2 * widest * (4 + itemsize))

    fits_fused = weight_bytes + align * per_row <= usable_vmem
    B_al = _round_up(B, align)

    if fits_fused:
        # ---- budget-driven batch tile (largest align-multiple that fits) ----
        if batch_tile is None:
            max_rows = (usable_vmem - weight_bytes) // per_row
            tile = max(align, _round_down(min(max_rows, 1024), align))
        else:
            tile = max(align, _round_up(batch_tile, align))
        tile = min(tile, B_al)
        # Only v7x (2 TensorCores) benefits from >=2 grid steps, and only when
        # each core gets a reasonable chunk; on v5e/v6e the grid is a serial
        # loop so extra steps are pure overhead.
        if gen >= 7 and B_al >= 2 * max(align, 256) and pl.cdiv(B_al, tile) < 2:
            tile = _round_up(pl.cdiv(B_al, 2), align)
        Bp = _round_up(B_al, tile)

        xp = jnp.zeros((Bp, in_p), compute_dtype).at[:B, :in_dim].set(
            x.astype(compute_dtype))

        flops = 2 * Bp * sum(w.shape[0] * w.shape[1] for w in padded_weights)
        bytes_accessed = (Bp * in_p * itemsize + weight_bytes
                          + Bp * out_p * out_itemsize)
        cost = pl.CostEstimate(flops=flops, transcendentals=0,
                               bytes_accessed=bytes_accessed)
        vmem_limit = min(usable_vmem,
                         max(32 << 20,
                             int(1.3 * (weight_bytes + tile * per_row))))

        kernel = functools.partial(_mlp_fused_kernel,
                                   activations=tuple(activations),
                                   compute_dtype=compute_dtype,
                                   relu_in_compute=relu_in_compute)

        def _run(single_buffer_weights):
            in_specs = [pl.BlockSpec((tile, in_p), lambda i: (i, 0))]
            for w in padded_weights:
                if single_buffer_weights:
                    # Constant index_map -> never needs a second pipeline buf.
                    in_specs.append(pl.BlockSpec(w.shape, lambda i: (0, 0),
                                                 pipeline_mode=pl.Buffered(1)))
                else:
                    in_specs.append(pl.BlockSpec(w.shape, lambda i: (0, 0)))
            return pl.pallas_call(
                kernel,
                out_shape=jax.ShapeDtypeStruct((Bp, out_p), out_dtype),
                grid=(Bp // tile,),
                in_specs=in_specs,
                out_specs=pl.BlockSpec((tile, out_p), lambda i: (i, 0)),
                compiler_params=pltpu.CompilerParams(
                    dimension_semantics=("parallel",),
                    vmem_limit_bytes=vmem_limit),
                cost_estimate=cost,
            )(xp, *padded_weights)

        try:
            out_padded = _run(True)
        except Exception:
            # Safety net for jax versions where Buffered(1) on a resident
            # block is rejected; fall back to default double-buffering.
            out_padded = _run(False)
    else:
        # ---- weights too large for resident VMEM: stream per-layer tiles ----
        tile = max(align, _round_down(min(512, B_al), align))
        if gen >= 7 and B_al >= 2 * max(align, 256) and pl.cdiv(B_al, tile) < 2:
            tile = _round_up(pl.cdiv(B_al, 2), align)
        Bp = _round_up(B_al, tile)
        xp = jnp.zeros((Bp, in_p), compute_dtype).at[:B, :in_dim].set(
            x.astype(compute_dtype))
        h = xp
        n_layers = len(padded_weights)
        for idx, (w, act) in enumerate(zip(padded_weights, activations)):
            layer_dtype = out_dtype if idx == n_layers - 1 else compute_dtype
            h = _tiled_linear(h, w, act, layer_dtype, tm=tile,
                              vmem_limit=usable_vmem)
        out_padded = h

    return out_padded[:B, :out_dim]


# --------------------------------------------------------------------------
# Pure-JAX reference & parameter builder (match module semantics / numerics)
# --------------------------------------------------------------------------
def mlp_forward_ref(x, weights, activations, compute_dtype=jnp.bfloat16):
    """Pure-JAX reference mirroring the kernel's numerics (eval mode)."""
    h = x.astype(compute_dtype)
    n = len(weights)
    for i, (w, act) in enumerate(zip(weights, activations)):
        acc = jnp.dot(h, w.astype(compute_dtype),
                      preferred_element_type=jnp.float32)
        if act == "relu":
            acc = jnp.maximum(acc, 0.0)
        h = acc if i == n - 1 else acc.astype(compute_dtype)
    return h.astype(x.dtype)


def build_mlp_params(key, inChNo, layerCfg, outChNo, dtype=jnp.float32):
    """Deterministic params matching MLP.build(): one LinearBlock(prev->cfg,
    bias=False, ReLU) per layerCfg entry, plus a final LinearBlock with
    lastActiv=None when outChNo is not None. Weights returned as [in, out].
    """
    weights, activations = [], []
    prev = inChNo
    for cfg in layerCfg:
        key, sub = jax.random.split(key)
        bound = 1.0 / math.sqrt(prev)  # ~ PyTorch default uniform bound
        weights.append(jax.random.uniform(sub, (prev, cfg), dtype,
                                          minval=-bound, maxval=bound))
        activations.append("relu")
        prev = cfg
    if outChNo is not None:
        key, sub = jax.random.split(key)
        bound = 1.0 / math.sqrt(prev)
        weights.append(jax.random.uniform(sub, (prev, outChNo), dtype,
                                          minval=-bound, maxval=bound))
        activations.append(None)  # lastActiv=None
    return weights, activations


if __name__ == "__main__":
    # Small-shape instance of MLP(inChNo=32, outChNo=16, layerCfg=(64, 64))
    B, inChNo, layerCfg, outChNo = 16, 32, (64, 64), 16

    key = jax.random.PRNGKey(0)
    key, xkey = jax.random.split(key)
    x = jax.random.normal(xkey, (B, inChNo), jnp.float32)

    weights, activations = build_mlp_params(key, inChNo, layerCfg, outChNo)

    # Pad/cast weights ONCE (model-build time), reuse on every forward call.
    padded_ws = prepare_mlp_weights(weights, inChNo)

    out = mlp_forward(x, padded_ws, activations, outChNo)
    out = jax.block_until_ready(out)

    ref = mlp_forward_ref(x, weights, activations)
    assert out.shape == (B, outChNo), out.shape
    max_err = float(jnp.max(jnp.abs(out - ref)))
    assert jnp.allclose(out, ref, atol=1e-2, rtol=1e-2), max_err

    print("KERNEL_OK")
</pallas_src>

<mosaic_0001>
module attributes {stable_mosaic.version = 11 : i64} {
  func.func @_mlp_fused_kernel(%arg0: i32, %arg1: memref<16x128xbf16, #tpu.memory_space<vmem>>, %arg2: memref<128x128xbf16, #tpu.memory_space<vmem>>, %arg3: memref<128x128xbf16, #tpu.memory_space<vmem>>, %arg4: memref<128x128xbf16, #tpu.memory_space<vmem>>, %arg5: memref<16x128xf32, #tpu.memory_space<vmem>>) attributes {dimension_semantics = [#tpu.dimension_semantics<parallel>], iteration_bounds = array<i64: 1>, scalar_prefetch = 0 : i64, scratch_operands = 0 : i64, tpu.core_type = #tpu.core_type<tc>, window_params = [{transform_indices = @transform_0, window_bounds = array<i64: 16, 128>}, {pipeline_mode = #tpu.pipeline_mode<synchronous>, transform_indices = @transform_1, window_bounds = array<i64: 128, 128>}, {pipeline_mode = #tpu.pipeline_mode<synchronous>, transform_indices = @transform_2, window_bounds = array<i64: 128, 128>}, {pipeline_mode = #tpu.pipeline_mode<synchronous>, transform_indices = @transform_3, window_bounds = array<i64: 128, 128>}, {transform_indices = @transform_4, window_bounds = array<i64: 16, 128>}]} {
    %c0 = arith.constant 0 : index
    %c0_0 = arith.constant 0 : index
    %0 = vector.load %arg1[%c0, %c0_0] : memref<16x128xbf16, #tpu.memory_space<vmem>>, vector<16x128xbf16>
    %c0_1 = arith.constant 0 : index
    %c0_2 = arith.constant 0 : index
    %1 = vector.load %arg2[%c0_1, %c0_2] : memref<128x128xbf16, #tpu.memory_space<vmem>>, vector<128x128xbf16>
    %cst = arith.constant dense<0.000000e+00> : vector<16x128xf32>
    %2 = tpu.matmul %0, %1, %cst {dimension_numbers = #tpu.dot_dimension_numbers<[1], [0], [0], [1], [0, 0, 1, 1], [], []>} : vector<16x128xbf16>, vector<128x128xbf16>, vector<16x128xf32> -> vector<16x128xf32>
    %3 = arith.truncf %2 : vector<16x128xf32> to vector<16x128xbf16>
    %cst_3 = arith.constant 0.000000e+00 : bf16
    %4 = vector.broadcast %cst_3 : bf16 to vector<16x128xbf16>
    %5 = arith.maximumf %3, %4 : vector<16x128xbf16>
    %c0_4 = arith.constant 0 : index
    %c0_5 = arith.constant 0 : index
    %6 = vector.load %arg3[%c0_4, %c0_5] : memref<128x128xbf16, #tpu.memory_space<vmem>>, vector<128x128xbf16>
    %cst_6 = arith.constant dense<0.000000e+00> : vector<16x128xf32>
    %7 = tpu.matmul %5, %6, %cst_6 {dimension_numbers = #tpu.dot_dimension_numbers<[1], [0], [0], [1], [0, 0, 1, 1], [], []>} : vector<16x128xbf16>, vector<128x128xbf16>, vector<16x128xf32> -> vector<16x128xf32>
    %8 = arith.truncf %7 : vector<16x128xf32> to vector<16x128xbf16>
    %cst_7 = arith.constant 0.000000e+00 : bf16
    %9 = vector.broadcast %cst_7 : bf16 to vector<16x128xbf16>
    %10 = arith.maximumf %8, %9 : vector<16x128xbf16>
    %c0_8 = arith.constant 0 : index
    %c0_9 = arith.constant 0 : index
    %11 = vector.load %arg4[%c0_8, %c0_9] : memref<128x128xbf16, #tpu.memory_space<vmem>>, vector<128x128xbf16>
    %cst_10 = arith.constant dense<0.000000e+00> : vector<16x128xf32>
    %12 = tpu.matmul %10, %11, %cst_10 {dimension_numbers = #tpu.dot_dimension_numbers<[1], [0], [0], [1], [0, 0, 1, 1], [], []>} : vector<16x128xbf16>, vector<128x128xbf16>, vector<16x128xf32> -> vector<16x128xf32>
    %c0_11 = arith.constant 0 : index
    %c0_12 = arith.constant 0 : index
    %13 = vector.load %arg5[%c0_11, %c0_12] : memref<16x128xf32, #tpu.memory_space<vmem>>, vector<16x128xf32>
    tpu.vector_store %arg5[%c0_11, %c0_12], %12 {strides = array<i32>} : memref<16x128xf32, #tpu.memory_space<vmem>>, vector<16x128xf32>,
    return
  }
  func.func @transform_0(%arg0: i32) -> (i32, i32) {
    %c0_i32 = arith.constant 0 : i32
    %c0_i32_0 = arith.constant 0 : i32
    return %arg0, %c0_i32 : i32, i32
  }
  func.func @transform_1(%arg0: i32) -> (i32, i32) {
    %c0_i32 = arith.constant 0 : i32
    %c0_i32_0 = arith.constant 0 : i32
    %c0_i32_1 = arith.constant 0 : i32
    return %c0_i32, %c0_i32_0 : i32, i32
  }
  func.func @transform_2(%arg0: i32) -> (i32, i32) {
    %c0_i32 = arith.constant 0 : i32
    %c0_i32_0 = arith.constant 0 : i32
    %c0_i32_1 = arith.constant 0 : i32
    return %c0_i32, %c0_i32_0 : i32, i32
  }
  func.func @transform_3(%arg0: i32) -> (i32, i32) {
    %c0_i32 = arith.constant 0 : i32
    %c0_i32_0 = arith.constant 0 : i32
    %c0_i32_1 = arith.constant 0 : i32
    return %c0_i32, %c0_i32_0 : i32, i32
  }
  func.func @transform_4(%arg0: i32) -> (i32, i32) {
    %c0_i32 = arith.constant 0 : i32
    %c0_i32_0 = arith.constant 0 : i32
    return %arg0, %c0_i32 : i32, i32
  }
}

module attributes {stable_mosaic.version = 11 : i64} {
  func.func @_mlp_fused_kernel(%arg0: i32, %arg1: memref<16x128xbf16, #tpu.memory_space<vmem>>, %arg2: memref<128x128xbf16, #tpu.memory_space<vmem>>, %arg3: memref<128x128xbf16, #tpu.memory_space<vmem>>, %arg4: memref<128x128xbf16, #tpu.memory_space<vmem>>, %arg5: memref<16x128xf32, #tpu.memory_space<vmem>>) attributes {dimension_semantics = [#tpu.dimension_semantics<parallel>], iteration_bounds = array<i64: 1>, scalar_prefetch = 0 : i64, scratch_operands = 0 : i64, tpu.core_type = #tpu.core_type<tc>, window_params = [{transform_indices = @transform_0, window_bounds = array<i64: 16, 128>}, {pipeline_mode = #tpu.pipeline_mode<synchronous>, transform_indices = @transform_1, window_bounds = array<i64: 128, 128>}, {pipeline_mode = #tpu.pipeline_mode<synchronous>, transform_indices = @transform_2, window_bounds = array<i64: 128, 128>}, {pipeline_mode = #tpu.pipeline_mode<synchronous>, transform_indices = @transform_3, window_bounds = array<i64: 128, 128>}, {transform_indices = @transform_4, window_bounds = array<i64: 16, 128>}]} {
    %c0 = arith.constant 0 : index
    %c0_0 = arith.constant 0 : index
    %0 = vector.load %arg1[%c0, %c0_0] : memref<16x128xbf16, #tpu.memory_space<vmem>>, vector<16x128xbf16>
    %c0_1 = arith.constant 0 : index
    %c0_2 = arith.constant 0 : index
    %1 = vector.load %arg2[%c0_1, %c0_2] : memref<128x128xbf16, #tpu.memory_space<vmem>>, vector<128x128xbf16>
    %cst = arith.constant dense<0.000000e+00> : vector<16x128xf32>
    %2 = tpu.matmul %0, %1, %cst {dimension_numbers = #tpu.dot_dimension_numbers<[1], [0], [0], [1], [0, 0, 1, 1], [], []>} : vector<16x128xbf16>, vector<128x128xbf16>, vector<16x128xf32> -> vector<16x128xf32>
    %3 = arith.truncf %2 : vector<16x128xf32> to vector<16x128xbf16>
    %cst_3 = arith.constant 0.000000e+00 : bf16
    %4 = vector.broadcast %cst_3 : bf16 to vector<16x128xbf16>
    %5 = arith.maximumf %3, %4 : vector<16x128xbf16>
    %c0_4 = arith.constant 0 : index
    %c0_5 = arith.constant 0 : index
    %6 = vector.load %arg3[%c0_4, %c0_5] : memref<128x128xbf16, #tpu.memory_space<vmem>>, vector<128x128xbf16>
    %cst_6 = arith.constant dense<0.000000e+00> : vector<16x128xf32>
    %7 = tpu.matmul %5, %6, %cst_6 {dimension_numbers = #tpu.dot_dimension_numbers<[1], [0], [0], [1], [0, 0, 1, 1], [], []>} : vector<16x128xbf16>, vector<128x128xbf16>, vector<16x128xf32> -> vector<16x128xf32>
    %8 = arith.truncf %7 : vector<16x128xf32> to vector<16x128xbf16>
    %cst_7 = arith.constant 0.000000e+00 : bf16
    %9 = vector.broadcast %cst_7 : bf16 to vector<16x128xbf16>
    %10 = arith.maximumf %8, %9 : vector<16x128xbf16>
    %c0_8 = arith.constant 0 : index
    %c0_9 = arith.constant 0 : index
    %11 = vector.load %arg4[%c0_8, %c0_9] : memref<128x128xbf16, #tpu.memory_space<vmem>>, vector<128x128xbf16>
    %cst_10 = arith.constant dense<0.000000e+00> : vector<16x128xf32>
    %12 = tpu.matmul %10, %11, %cst_10 {dimension_numbers = #tpu.dot_dimension_numbers<[1], [0], [0], [1], [0, 0, 1, 1], [], []>} : vector<16x128xbf16>, vector<128x128xbf16>, vector<16x128xf32> -> vector<16x128xf32>
    %c0_11 = arith.constant 0 : index
    %c0_12 = arith.constant 0 : index
    %13 = vector.load %arg5[%c0_11, %c0_12] : memref<16x128xf32, #tpu.memory_space<vmem>>, vector<16x128xf32>
    tpu.vector_store %arg5[%c0_11, %c0_12], %12 {strides = array<i32>} : memref<16x128xf32, #tpu.memory_space<vmem>>, vector<16x128xf32>,
    return
  }
  func.func @transform_0(%arg0: i32) -> (i32, i32) {
    %c0_i32 = arith.constant 0 : i32
    %c0_i32_0 = arith.constant 0 : i32
    return %arg0, %c0_i32 : i32, i32
  }
  func.func @transform_1(%arg0: i32) -> (i32, i32) {
    %c0_i32 = arith.constant 0 : i32
    %c0_i32_0 = arith.constant 0 : i32
    %c0_i32_1 = arith.constant 0 : i32
    return %c0_i32, %c0_i32_0 : i32, i32
  }
  func.func @transform_2(%arg0: i32) -> (i32, i32) {
    %c0_i32 = arith.constant 0 : i32
    %c0_i32_0 = arith.constant 0 : i32
    %c0_i32_1 = arith.constant 0 : i32
    return %c0_i32, %c0_i32_0 : i32, i32
  }
  func.func @transform_3(%arg0: i32) -> (i32, i32) {
    %c0_i32 = arith.constant 0 : i32
    %c0_i32_0 = arith.constant 0 : i32
    %c0_i32_1 = arith.constant 0 : i32
    return %c0_i32, %c0_i32_0 : i32, i32
  }
  func.func @transform_4(%arg0: i32) -> (i32, i32) {
    %c0_i32 = arith.constant 0 : i32
    %c0_i32_0 = arith.constant 0 : i32
    return %arg0, %c0_i32 : i32, i32
  }
}

</mosaic_0001>

<llo_original>
// kernel: tpu_custom_call.1
$region0: #{tpu_custom_call.1}
  #allocation0 [shape = 'u32[]', space=smem, size = 0x4, offset = 0x4, fixed_abs, tag = 'smem constant byte address 0x4 - core index']
  #allocation1 [shape = 'u32[144,128]{1,0:T(1,128)}', space=vmem, size = 0x12000, scoped, tag = 'internal scratch']
  %s0 = inlined_call_operand.hbm [shape: bf16[16,128], index: 0, kind: input, shape index: {}]
  %s1 = inlined_call_operand.hbm [shape: bf16[128,128], index: 1, kind: input, shape index: {}]
  %s2 = inlined_call_operand.hbm [shape: bf16[128,128], index: 2, kind: input, shape index: {}]
  %s3 = inlined_call_operand.hbm [shape: bf16[128,128], index: 3, kind: input, shape index: {}]
  %s4 = inlined_call_operand.hbm [shape: f32[16,128], index: 4, kind: output, shape index: {}]
  %s5 = sld [smem:[#allocation0]]
  $region42: #{tpu_custom_call.1} parent=0
    _
  %s7 = ssub.s32 1, %s5
  %s8 = scalar_select 0, %s7, %s5
  $region1: #{tpu_custom_call.1} parent=0
    #allocation2 [shape = 'u8[4096]{0}', space=vmem, size = 0x1000, scoped, tag = 'input window, operand 0, single buffered']
    #allocation3 [shape = 's32[1]{0}', space=sflag, size = 0x4, scoped, tag = 'scoped memory for tpu_custom_call.1']
    #allocation4 [shape = 's32[1]{0}', space=sflag, size = 0x4, scoped, tag = 'scoped memory for tpu_custom_call.1']
    #allocation5 [shape = 'u8[32768]{0}', space=vmem, size = 0x8000, scoped, tag = 'input window, operand 1, single buffered']
    #allocation6 [shape = 's32[1]{0}', space=sflag, size = 0x4, scoped, tag = 'scoped memory for tpu_custom_call.1']
    #allocation7 [shape = 'u8[32768]{0}', space=vmem, size = 0x8000, scoped, tag = 'input window, operand 2, single buffered']
    #allocation8 [shape = 'u8[32768]{0}', space=vmem, size = 0x8000, scoped, tag = 'input window, operand 3, single buffered']
    #allocation9 [shape = 's32[1]{0}', space=sflag, size = 0x4, scoped, tag = 'scoped memory for tpu_custom_call.1']
    #allocation10 [shape = 'u8[8192]{0}', space=vmem, size = 0x2000, scoped, tag = 'output window, operand 0, single buffered']
    %9 = vsyncpa [#allocation3], 0
    %10 = vsyncpa [#allocation6], 0
    %11 = vsyncpa [#allocation9], 0
    %12 = vsyncpa [#allocation4], 0
    // Predicated region
    $region2: #{tpu_custom_call.1} parent=1 // pred_check
      _
    $region3: #{tpu_custom_call.1} parent=1 // pred_check_branch
      %14 = sbr.rel (0) target = $region5
    $region4: #{tpu_custom_call.1} parent=1 // pred_region
      %s16 = ssub.s32 128, 128
      %17 = vsyncadd [#allocation3], %s16
      %s18 = sshll.u32 [#allocation2], 4
      %s19 = int_to_ptr.vmem [resolvable:$true] %s18
      %24 = dma.hbm_to_vmem [thread:$0]  %s0, 128, %s19, [#allocation3], 64, 64, 4
    $region5: #{tpu_custom_call.1} parent=1 // pred_fallthru
      _
    // Predicated region
    $region6: #{tpu_custom_call.1} parent=1 // pred_check
      _
    $region7: #{tpu_custom_call.1} parent=1 // pred_check_branch
      %26 = sbr.rel (0) target = $region9
    $region8: #{tpu_custom_call.1} parent=1 // pred_region
      %s28 = ssub.s32 1024, 1024
      %29 = vsyncadd [#allocation6], %s28
      %s30 = sshll.u32 [#allocation5], 4
      %s31 = int_to_ptr.vmem [resolvable:$true] %s30
      %36 = dma.hbm_to_vmem [thread:$0]  %s1, 1024, %s31, [#allocation6], 64, 64, 4
    $region9: #{tpu_custom_call.1} parent=1 // pred_fallthru
      _
    // Predicated region
    $region10: #{tpu_custom_call.1} parent=1 // pred_check
      _
    $region11: #{tpu_custom_call.1} parent=1 // pred_check_branch
      %38 = sbr.rel (0) target = $region13
    $region12: #{tpu_custom_call.1} parent=1 // pred_region
      %s40 = ssub.s32 1024, 1024
      %41 = vsyncadd [#allocation6], %s40
      %s42 = sshll.u32 [#allocation7], 4
      %s43 = int_to_ptr.vmem [resolvable:$true] %s42
      %48 = dma.hbm_to_vmem [thread:$0]  %s2, 1024, %s43, [#allocation6], 64, 64, 4
    $region13: #{tpu_custom_call.1} parent=1 // pred_fallthru
      _
    // Predicated region
    $region14: #{tpu_custom_call.1} parent=1 // pred_check
      _
    $region15: #{tpu_custom_call.1} parent=1 // pred_check_branch
      %50 = sbr.rel (0) target = $region17
    $region16: #{tpu_custom_call.1} parent=1 // pred_region
      %s52 = ssub.s32 1024, 1024
      %53 = vsyncadd [#allocation9], %s52
      %s54 = sshll.u32 [#allocation8], 4
      %s55 = int_to_ptr.vmem [resolvable:$true] %s54
      %60 = dma.hbm_to_vmem [thread:$0]  %s3, 1024, %s55, [#allocation9], 64, 64, 4
    $region17: #{tpu_custom_call.1} parent=1 // pred_fallthru
      _
    // Predicated region
    $region18: #{tpu_custom_call.1} parent=1 // pred_check
      _
    $region19: #{tpu_custom_call.1} parent=1 // pred_check_branch
      %62 = sbr.rel (0) target = $region21
    $region20: #{tpu_custom_call.1} parent=1 // pred_region
      %63 = dma.done [#allocation3], 128
    $region21: #{tpu_custom_call.1} parent=1 // pred_fallthru
      _
    // Predicated region
    $region22: #{tpu_custom_call.1} parent=1 // pred_check
      _
    $region23: #{tpu_custom_call.1} parent=1 // pred_check_branch
      %65 = sbr.rel (0) target = $region25
    $region24: #{tpu_custom_call.1} parent=1 // pred_region
      %66 = dma.done [#allocation6], 1024
    $region25: #{tpu_custom_call.1} parent=1 // pred_fallthru
      _
    // Predicated region
    $region26: #{tpu_custom_call.1} parent=1 // pred_check
      _
    $region27: #{tpu_custom_call.1} parent=1 // pred_check_branch
      %68 = sbr.rel (0) target = $region29
    $region28: #{tpu_custom_call.1} parent=1 // pred_region
      %69 = dma.done [#allocation6], 1024
    $region29: #{tpu_custom_call.1} parent=1 // pred_fallthru
      _
    // Predicated region
    $region30: #{tpu_custom_call.1} parent=1 // pred_check
      _
    $region31: #{tpu_custom_call.1} parent=1 // pred_check_branch
      %71 = sbr.rel (0) target = $region33
    $region32: #{tpu_custom_call.1} parent=1 // pred_region
      %72 = dma.done [#allocation9], 1024
    $region33: #{tpu_custom_call.1} parent=1 // pred_fallthru
      _
    %v74 = vld [vmem:[#allocation2] sm:$0xf]
    %v75 = vld [vmem:[#allocation2 + $0x4] sm:$0xf]
    %v76 = vld [vmem:[#allocation5] sm:$0xf]
    %v77 = vld [vmem:[#allocation5 + $0x4] sm:$0xf]
    %v78 = vld [vmem:[#allocation5 + $0x8] sm:$0xf]
    %v79 = vld [vmem:[#allocation5 + $0xc] sm:$0xf]
    %v80 = vld [vmem:[#allocation5 + $0x10] sm:$0xf]
    %v81 = vld [vmem:[#allocation5 + $0x14] sm:$0xf]
    %v82 = vld [vmem:[#allocation5 + $0x18] sm:$0xf]
    %v83 = vld [vmem:[#allocation5 + $0x1c] sm:$0xf]
    %v84 = vld [vmem:[#allocation5 + $0x20] sm:$0xf]
    %v85 = vld [vmem:[#allocation5 + $0x24] sm:$0xf]
    %v86 = vld [vmem:[#allocation5 + $0x28] sm:$0xf]
    %v87 = vld [vmem:[#allocation5 + $0x2c] sm:$0xf]
    %v88 = vld [vmem:[#allocation5 + $0x30] sm:$0xf]
    %v89 = vld [vmem:[#allocation5 + $0x34] sm:$0xf]
    %v90 = vld [vmem:[#allocation5 + $0x38] sm:$0xf]
    %v91 = vld [vmem:[#allocation5 + $0x3c] sm:$0xf]
    %v94 = vunpack.c.l.b16 %v74
    %v95 = vunpack.c.l.b16 %v75
    %v96 = vpack.c.b16 %v95, %v94
    %v114 = vunpack.c.l.b16 %v76
    %v115 = vunpack.c.l.b16 %v77
    %v116 = vunpack.c.l.b16 %v78
    %v117 = vunpack.c.l.b16 %v79
    %v118 = vunpack.c.l.b16 %v80
    %v119 = vunpack.c.l.b16 %v81
    %v120 = vunpack.c.l.b16 %v82
    %v121 = vunpack.c.l.b16 %v83
    %v122 = vunpack.c.l.b16 %v84
    %v123 = vunpack.c.l.b16 %v85
    %v124 = vunpack.c.l.b16 %v86
    %v125 = vunpack.c.l.b16 %v87
    %v126 = vunpack.c.l.b16 %v88
    %v127 = vunpack.c.l.b16 %v89
    %v128 = vunpack.c.l.b16 %v90
    %v129 = vunpack.c.l.b16 %v91
    %v130 = vpack.c.b16 %v115, %v114
    %v131 = vpack.c.b16 %v117, %v116
    %v132 = vpack.c.b16 %v119, %v118
    %v133 = vpack.c.b16 %v121, %v120
    %v134 = vpack.c.b16 %v123, %v122
    %v135 = vpack.c.b16 %v125, %v124
    %v136 = vpack.c.b16 %v127, %v126
    %v137 = vpack.c.b16 %v129, %v128
    %146 = vmatprep.subr.bf16.mxu0 0
    %147 = vmatpush1.bf16.msra.mxu0 %v137
    %148 = vmatprep.subr.bf16.mxu0 0
    %149 = vmatpush1.bf16.msra.mxu0 %v136
    %150 = vmatprep.subr.bf16.mxu0 0
    %151 = vmatpush1.bf16.msra.mxu0 %v135
    %152 = vmatprep.subr.bf16.mxu0 0
    %153 = vmatpush1.bf16.msra.mxu0 %v134
    %154 = vmatprep.subr.bf16.mxu0 0
    %155 = vmatpush1.bf16.msra.mxu0 %v133
    %156 = vmatprep.subr.bf16.mxu0 0
    %157 = vmatpush1.bf16.msra.mxu0 %v132
    %158 = vmatprep.subr.bf16.mxu0 0
    %159 = vmatpush1.bf16.msra.mxu0 %v131
    %160 = vmatprep.subr.bf16.mxu0 0
    %161 = vmatpush1.bf16.msra.mxu0 %v130
    %162 = vmatprep.subr.bf16.mxu0 0
    %163 = vmatpush2.bf16.msra.mxu0 0
    %164 = vmatprep.subr.bf16.mxu0 0
    %165 = vmatpush2.bf16.msra.mxu0 0
    %166 = vmatprep.subr.bf16.mxu0 0
    %167 = vmatpush2.bf16.msra.mxu0 0
    %168 = vmatprep.subr.bf16.mxu0 0
    %169 = vmatpush2.bf16.msra.mxu0 0
    %170 = vmatprep.subr.bf16.mxu0 0
    %171 = vmatpush2.bf16.msra.mxu0 0
    %172 = vmatprep.subr.bf16.mxu0 0
    %173 = vmatpush2.bf16.msra.mxu0 0
    %174 = vmatprep.subr.bf16.mxu0 0
    %175 = vmatpush2.bf16.msra.mxu0 0
    %176 = vmatprep.subr.bf16.mxu0 0
    %177 = vmatpush2.bf16.msra.mxu0 0
    %178 = vmatprep.mubr.bf16.mxu0 0
    %179 = vmatmul.mubr.bf16.gmra.mxu0 %v96
    %v180 = vpop.f32.mrf.mxu0
    %v181 = vadd.f32 0.0, %v180
    %v182 = vpop.f32.mrf.mxu0
    %v183 = vpop.f32.mrf.mxu0
    %v184 = vadd.f32 0.0, %v183
    %v185 = vpop.f32.mrf.mxu0
    %186 = vdwg.mxu0
    %v187 = vpack.c.bf16 %v184, %v181
    %v188 = vmax.bf16 %v187, 0
    %v189 = vld [vmem:[#allocation7] sm:$0xf]
    %v190 = vld [vmem:[#allocation7 + $0x4] sm:$0xf]
    %v191 = vld [vmem:[#allocation7 + $0x8] sm:$0xf]
    %v192 = vld [vmem:[#allocation7 + $0xc] sm:$0xf]
    %v193 = vld [vmem:[#allocation7 + $0x10] sm:$0xf]
    %v194 = vld [vmem:[#allocation7 + $0x14] sm:$0xf]
    %v195 = vld [vmem:[#allocation7 + $0x18] sm:$0xf]
    %v196 = vld [vmem:[#allocation7 + $0x1c] sm:$0xf]
    %v197 = vld [vmem:[#allocation7 + $0x20] sm:$0xf]
    %v198 = vld [vmem:[#allocation7 + $0x24] sm:$0xf]
    %v199 = vld [vmem:[#allocation7 + $0x28] sm:$0xf]
    %v200 = vld [vmem:[#allocation7 + $0x2c] sm:$0xf]
    %v201 = vld [vmem:[#allocation7 + $0x30] sm:$0xf]
    %v202 = vld [vmem:[#allocation7 + $0x34] sm:$0xf]
    %v203 = vld [vmem:[#allocation7 + $0x38] sm:$0xf]
    %v204 = vld [vmem:[#allocation7 + $0x3c] sm:$0xf]
    %v221 = vunpack.c.l.b16 %v189
    %v222 = vunpack.c.l.b16 %v190
    %v223 = vunpack.c.l.b16 %v191
    %v224 = vunpack.c.l.b16 %v192
    %v225 = vunpack.c.l.b16 %v193
    %v226 = vunpack.c.l.b16 %v194
    %v227 = vunpack.c.l.b16 %v195
    %v228 = vunpack.c.l.b16 %v196
    %v229 = vunpack.c.l.b16 %v197
    %v230 = vunpack.c.l.b16 %v198
    %v231 = vunpack.c.l.b16 %v199
    %v232 = vunpack.c.l.b16 %v200
    %v233 = vunpack.c.l.b16 %v201
    %v234 = vunpack.c.l.b16 %v202
    %v235 = vunpack.c.l.b16 %v203
    %v236 = vunpack.c.l.b16 %v204
    %v237 = vpack.c.b16 %v222, %v221
    %v238 = vpack.c.b16 %v224, %v223
    %v239 = vpack.c.b16 %v226, %v225
    %v240 = vpack.c.b16 %v228, %v227
    %v241 = vpack.c.b16 %v230, %v229
    %v242 = vpack.c.b16 %v232, %v231
    %v243 = vpack.c.b16 %v234, %v233
    %v244 = vpack.c.b16 %v236, %v235
    %253 = vmatprep.subr.bf16.mxu0 0
    %254 = vmatpush1.bf16.msra.mxu0 %v244
    %255 = vmatprep.subr.bf16.mxu0 0
    %256 = vmatpush1.bf16.msra.mxu0 %v243
    %257 = vmatprep.subr.bf16.mxu0 0
    %258 = vmatpush1.bf16.msra.mxu0 %v242
    %259 = vmatprep.subr.bf16.mxu0 0
    %260 = vmatpush1.bf16.msra.mxu0 %v241
    %261 = vmatprep.subr.bf16.mxu0 0
    %262 = vmatpush1.bf16.msra.mxu0 %v240
    %263 = vmatprep.subr.bf16.mxu0 0
    %264 = vmatpush1.bf16.msra.mxu0 %v239
    %265 = vmatprep.subr.bf16.mxu0 0
    %266 = vmatpush1.bf16.msra.mxu0 %v238
    %267 = vmatprep.subr.bf16.mxu0 0
    %268 = vmatpush1.bf16.msra.mxu0 %v237
    %269 = vmatprep.subr.bf16.mxu0 0
    %270 = vmatpush2.bf16.msra.mxu0 0
    %271 = vmatprep.subr.bf16.mxu0 0
    %272 = vmatpush2.bf16.msra.mxu0 0
    %273 = vmatprep.subr.bf16.mxu0 0
    %274 = vmatpush2.bf16.msra.mxu0 0
    %275 = vmatprep.subr.bf16.mxu0 0
    %276 = vmatpush2.bf16.msra.mxu0 0
    %277 = vmatprep.subr.bf16.mxu0 0
    %278 = vmatpush2.bf16.msra.mxu0 0
    %279 = vmatprep.subr.bf16.mxu0 0
    %280 = vmatpush2.bf16.msra.mxu0 0
    %281 = vmatprep.subr.bf16.mxu0 0
    %282 = vmatpush2.bf16.msra.mxu0 0
    %283 = vmatprep.subr.bf16.mxu0 0
    %284 = vmatpush2.bf16.msra.mxu0 0
    %285 = vmatprep.mubr.bf16.mxu0 0
    %286 = vmatmul.mubr.bf16.gmra.mxu0 %v188
    %v287 = vpop.f32.mrf.mxu0
    %v288 = vadd.f32 0.0, %v287
    %v289 = vpop.f32.mrf.mxu0
    %v290 = vpop.f32.mrf.mxu0
    %v291 = vadd.f32 0.0, %v290
    %v292 = vpop.f32.mrf.mxu0
    %293 = vdwg.mxu0
    %v294 = vpack.c.bf16 %v291, %v288
    %v295 = vmax.bf16 %v294, 0
    %v296 = vld [vmem:[#allocation8] sm:$0xf]
    %v297 = vld [vmem:[#allocation8 + $0x4] sm:$0xf]
    %v298 = vld [vmem:[#allocation8 + $0x8] sm:$0xf]
    %v299 = vld [vmem:[#allocation8 + $0xc] sm:$0xf]
    %v300 = vld [vmem:[#allocation8 + $0x10] sm:$0xf]
    %v301 = vld [vmem:[#allocation8 + $0x14] sm:$0xf]
    %v302 = vld [vmem:[#allocation8 + $0x18] sm:$0xf]
    %v303 = vld [vmem:[#allocation8 + $0x1c] sm:$0xf]
    %v304 = vld [vmem:[#allocation8 + $0x20] sm:$0xf]
    %v305 = vld [vmem:[#allocation8 + $0x24] sm:$0xf]
    %v306 = vld [vmem:[#allocation8 + $0x28] sm:$0xf]
    %v307 = vld [vmem:[#allocation8 + $0x2c] sm:$0xf]
    %v308 = vld [vmem:[#allocation8 + $0x30] sm:$0xf]
    %v309 = vld [vmem:[#allocation8 + $0x34] sm:$0xf]
    %v310 = vld [vmem:[#allocation8 + $0x38] sm:$0xf]
    %v311 = vld [vmem:[#allocation8 + $0x3c] sm:$0xf]
    %v328 = vunpack.c.l.b16 %v296
    %v329 = vunpack.c.l.b16 %v297
    %v330 = vunpack.c.l.b16 %v298
    %v331 = vunpack.c.l.b16 %v299
    %v332 = vunpack.c.l.b16 %v300
    %v333 = vunpack.c.l.b16 %v301
    %v334 = vunpack.c.l.b16 %v302
    %v335 = vunpack.c.l.b16 %v303
    %v336 = vunpack.c.l.b16 %v304
    %v337 = vunpack.c.l.b16 %v305
    %v338 = vunpack.c.l.b16 %v306
    %v339 = vunpack.c.l.b16 %v307
    %v340 = vunpack.c.l.b16 %v308
    %v341 = vunpack.c.l.b16 %v309
    %v342 = vunpack.c.l.b16 %v310
    %v343 = vunpack.c.l.b16 %v311
    %v344 = vpack.c.b16 %v329, %v328
    %v345 = vpack.c.b16 %v331, %v330
    %v346 = vpack.c.b16 %v333, %v332
    %v347 = vpack.c.b16 %v335, %v334
    %v348 = vpack.c.b16 %v337, %v336
    %v349 = vpack.c.b16 %v339, %v338
    %v350 = vpack.c.b16 %v341, %v340
    %v351 = vpack.c.b16 %v343, %v342
    %360 = vmatprep.subr.bf16.mxu0 0
    %361 = vmatpush1.bf16.msra.mxu0 %v351
    %362 = vmatprep.subr.bf16.mxu0 0
    %363 = vmatpush1.bf16.msra.mxu0 %v350
    %364 = vmatprep.subr.bf16.mxu0 0
    %365 = vmatpush1.bf16.msra.mxu0 %v349
    %366 = vmatprep.subr.bf16.mxu0 0
    %367 = vmatpush1.bf16.msra.mxu0 %v348
    %368 = vmatprep.subr.bf16.mxu0 0
    %369 = vmatpush1.bf16.msra.mxu0 %v347
    %370 = vmatprep.subr.bf16.mxu0 0
    %371 = vmatpush1.bf16.msra.mxu0 %v346
    %372 = vmatprep.subr.bf16.mxu0 0
    %373 = vmatpush1.bf16.msra.mxu0 %v345
    %374 = vmatprep.subr.bf16.mxu0 0
    %375 = vmatpush1.bf16.msra.mxu0 %v344
    %376 = vmatprep.subr.bf16.mxu0 0
    %377 = vmatpush2.bf16.msra.mxu0 0
    %378 = vmatprep.subr.bf16.mxu0 0
    %379 = vmatpush2.bf16.msra.mxu0 0
    %380 = vmatprep.subr.bf16.mxu0 0
    %381 = vmatpush2.bf16.msra.mxu0 0
    %382 = vmatprep.subr.bf16.mxu0 0
    %383 = vmatpush2.bf16.msra.mxu0 0
    %384 = vmatprep.subr.bf16.mxu0 0
    %385 = vmatpush2.bf16.msra.mxu0 0
    %386 = vmatprep.subr.bf16.mxu0 0
    %387 = vmatpush2.bf16.msra.mxu0 0
    %388 = vmatprep.subr.bf16.mxu0 0
    %389 = vmatpush2.bf16.msra.mxu0 0
    %390 = vmatprep.subr.bf16.mxu0 0
    %391 = vmatpush2.bf16.msra.mxu0 0
    %392 = vmatprep.mubr.bf16.mxu0 0
    %393 = vmatmul.mubr.bf16.gmra.mxu0 %v295
    %v394 = vpop.f32.mrf.mxu0
    %v395 = vadd.f32 0.0, %v394
    %v396 = vpop.f32.mrf.mxu0
    %v397 = vpop.f32.mrf.mxu0
    %v398 = vadd.f32 0.0, %v397
    %v399 = vpop.f32.mrf.mxu0
    %400 = vdwg.mxu0
    %401 = vst [vmem:[#allocation10] sm:$0xff] %v395
    %402 = vst [vmem:[#allocation10 + $0x8] sm:$0xff] %v398
    // Predicated region
    $region34: #{tpu_custom_call.1} parent=1 // pred_check
      _
    $region35: #{tpu_custom_call.1} parent=1 // pred_check_branch
      %404 = sbr.rel (0) target = $region37
    $region36: #{tpu_custom_call.1} parent=1 // pred_region
      %s406 = ssub.s32 256, 256
      %407 = vsyncadd [#allocation4], %s406
      %s408 = sshll.u32 [#allocation10], 4
      %s409 = int_to_ptr.vmem [resolvable:$true] %s408
      %414 = dma.vmem_to_hbm [thread:$0]  %s409, 256, %s4, [#allocation4], 128, 128, 8
    $region37: #{tpu_custom_call.1} parent=1 // pred_fallthru
      _
    // Predicated region
    $region38: #{tpu_custom_call.1} parent=1 // pred_check
      _
    $region39: #{tpu_custom_call.1} parent=1 // pred_check_branch
      %416 = sbr.rel (0) target = $region41
    $region40: #{tpu_custom_call.1} parent=1 // pred_region
      %417 = dma.done [#allocation4], 256
    $region41: #{tpu_custom_call.1} parent=1 // pred_fallthru
      _
    %418 = vsyncpa [#allocation3], 1
    %419 = vsyncpa [#allocation6], 1
    %420 = vsyncpa [#allocation9], 1
    %421 = vsyncpa [#allocation4], 1

// kernel: tpu_custom_call.1
$region0: #{tpu_custom_call.1}
  #allocation0 [shape = 'u32[]', space=smem, size = 0x4, offset = 0x4, fixed_abs, tag = 'smem constant byte address 0x4 - core index']
  #allocation1 [shape = 'u32[144,128]{1,0:T(1,128)}', space=vmem, size = 0x12000, scoped, tag = 'internal scratch']
  %s0 = inlined_call_operand.hbm [shape: bf16[16,128], index: 0, kind: input, shape index: {}]
  %s1 = inlined_call_operand.hbm [shape: bf16[128,128], index: 1, kind: input, shape index: {}]
  %s2 = inlined_call_operand.hbm [shape: bf16[128,128], index: 2, kind: input, shape index: {}]
  %s3 = inlined_call_operand.hbm [shape: bf16[128,128], index: 3, kind: input, shape index: {}]
  %s4 = inlined_call_operand.hbm [shape: f32[16,128], index: 4, kind: output, shape index: {}]
  %s5 = sld [smem:[#allocation0]]
  $region42: #{tpu_custom_call.1} parent=0
    _
  %s7 = ssub.s32 1, %s5
  %s8 = scalar_select 0, %s7, %s5
  $region1: #{tpu_custom_call.1} parent=0
    #allocation2 [shape = 'u8[4096]{0}', space=vmem, size = 0x1000, scoped, tag = 'input window, operand 0, single buffered']
    #allocation3 [shape = 's32[1]{0}', space=sflag, size = 0x4, scoped, tag = 'scoped memory for tpu_custom_call.1']
    #allocation4 [shape = 's32[1]{0}', space=sflag, size = 0x4, scoped, tag = 'scoped memory for tpu_custom_call.1']
    #allocation5 [shape = 'u8[32768]{0}', space=vmem, size = 0x8000, scoped, tag = 'input window, operand 1, single buffered']
    #allocation6 [shape = 's32[1]{0}', space=sflag, size = 0x4, scoped, tag = 'scoped memory for tpu_custom_call.1']
    #allocation7 [shape = 'u8[32768]{0}', space=vmem, size = 0x8000, scoped, tag = 'input window, operand 2, single buffered']
    #allocation8 [shape = 'u8[32768]{0}', space=vmem, size = 0x8000, scoped, tag = 'input window, operand 3, single buffered']
    #allocation9 [shape = 's32[1]{0}', space=sflag, size = 0x4, scoped, tag = 'scoped memory for tpu_custom_call.1']
    #allocation10 [shape = 'u8[8192]{0}', space=vmem, size = 0x2000, scoped, tag = 'output window, operand 0, single buffered']
    %9 = vsyncpa [#allocation3], 0
    %10 = vsyncpa [#allocation6], 0
    %11 = vsyncpa [#allocation9], 0
    %12 = vsyncpa [#allocation4], 0
    // Predicated region
    $region2: #{tpu_custom_call.1} parent=1 // pred_check
      _
    $region3: #{tpu_custom_call.1} parent=1 // pred_check_branch
      %14 = sbr.rel (0) target = $region5
    $region4: #{tpu_custom_call.1} parent=1 // pred_region
      %s16 = ssub.s32 128, 128
      %17 = vsyncadd [#allocation3], %s16
      %s18 = sshll.u32 [#allocation2], 4
      %s19 = int_to_ptr.vmem [resolvable:$true] %s18
      %24 = dma.hbm_to_vmem [thread:$0]  %s0, 128, %s19, [#allocation3], 64, 64, 4
    $region5: #{tpu_custom_call.1} parent=1 // pred_fallthru
      _
    // Predicated region
    $region6: #{tpu_custom_call.1} parent=1 // pred_check
      _
    $region7: #{tpu_custom_call.1} parent=1 // pred_check_branch
      %26 = sbr.rel (0) target = $region9
    $region8: #{tpu_custom_call.1} parent=1 // pred_region
      %s28 = ssub.s32 1024, 1024
      %29 = vsyncadd [#allocation6], %s28
      %s30 = sshll.u32 [#allocation5], 4
      %s31 = int_to_ptr.vmem [resolvable:$true] %s30
      %36 = dma.hbm_to_vmem [thread:$0]  %s1, 1024, %s31, [#allocation6], 64, 64, 4
    $region9: #{tpu_custom_call.1} parent=1 // pred_fallthru
      _
    // Predicated region
    $region10: #{tpu_custom_call.1} parent=1 // pred_check
      _
    $region11: #{tpu_custom_call.1} parent=1 // pred_check_branch
      %38 = sbr.rel (0) target = $region13
    $region12: #{tpu_custom_call.1} parent=1 // pred_region
      %s40 = ssub.s32 1024, 1024
      %41 = vsyncadd [#allocation6], %s40
      %s42 = sshll.u32 [#allocation7], 4
      %s43 = int_to_ptr.vmem [resolvable:$true] %s42
      %48 = dma.hbm_to_vmem [thread:$0]  %s2, 1024, %s43, [#allocation6], 64, 64, 4
    $region13: #{tpu_custom_call.1} parent=1 // pred_fallthru
      _
    // Predicated region
    $region14: #{tpu_custom_call.1} parent=1 // pred_check
      _
    $region15: #{tpu_custom_call.1} parent=1 // pred_check_branch
      %50 = sbr.rel (0) target = $region17
    $region16: #{tpu_custom_call.1} parent=1 // pred_region
      %s52 = ssub.s32 1024, 1024
      %53 = vsyncadd [#allocation9], %s52
      %s54 = sshll.u32 [#allocation8], 4
      %s55 = int_to_ptr.vmem [resolvable:$true] %s54
      %60 = dma.hbm_to_vmem [thread:$0]  %s3, 1024, %s55, [#allocation9], 64, 64, 4
    $region17: #{tpu_custom_call.1} parent=1 // pred_fallthru
      _
    // Predicated region
    $region18: #{tpu_custom_call.1} parent=1 // pred_check
      _
    $region19: #{tpu_custom_call.1} parent=1 // pred_check_branch
      %62 = sbr.rel (0) target = $region21
    $region20: #{tpu_custom_call.1} parent=1 // pred_region
      %63 = dma.done [#allocation3], 128
    $region21: #{tpu_custom_call.1} parent=1 // pred_fallthru
      _
    // Predicated region
    $region22: #{tpu_custom_call.1} parent=1 // pred_check
      _
    $region23: #{tpu_custom_call.1} parent=1 // pred_check_branch
      %65 = sbr.rel (0) target = $region25
    $region24: #{tpu_custom_call.1} parent=1 // pred_region
      %66 = dma.done [#allocation6], 1024
    $region25: #{tpu_custom_call.1} parent=1 // pred_fallthru
      _
    // Predicated region
    $region26: #{tpu_custom_call.1} parent=1 // pred_check
      _
    $region27: #{tpu_custom_call.1} parent=1 // pred_check_branch
      %68 = sbr.rel (0) target = $region29
    $region28: #{tpu_custom_call.1} parent=1 // pred_region
      %69 = dma.done [#allocation6], 1024
    $region29: #{tpu_custom_call.1} parent=1 // pred_fallthru
      _
    // Predicated region
    $region30: #{tpu_custom_call.1} parent=1 // pred_check
      _
    $region31: #{tpu_custom_call.1} parent=1 // pred_check_branch
      %71 = sbr.rel (0) target = $region33
    $region32: #{tpu_custom_call.1} parent=1 // pred_region
      %72 = dma.done [#allocation9], 1024
    $region33: #{tpu_custom_call.1} parent=1 // pred_fallthru
      _
    %v74 = vld [vmem:[#allocation2] sm:$0xf]
    %v75 = vld [vmem:[#allocation2 + $0x4] sm:$0xf]
    %v76 = vld [vmem:[#allocation5] sm:$0xf]
    %v77 = vld [vmem:[#allocation5 + $0x4] sm:$0xf]
    %v78 = vld [vmem:[#allocation5 + $0x8] sm:$0xf]
    %v79 = vld [vmem:[#allocation5 + $0xc] sm:$0xf]
    %v80 = vld [vmem:[#allocation5 + $0x10] sm:$0xf]
    %v81 = vld [vmem:[#allocation5 + $0x14] sm:$0xf]
    %v82 = vld [vmem:[#allocation5 + $0x18] sm:$0xf]
    %v83 = vld [vmem:[#allocation5 + $0x1c] sm:$0xf]
    %v84 = vld [vmem:[#allocation5 + $0x20] sm:$0xf]
    %v85 = vld [vmem:[#allocation5 + $0x24] sm:$0xf]
    %v86 = vld [vmem:[#allocation5 + $0x28] sm:$0xf]
    %v87 = vld [vmem:[#allocation5 + $0x2c] sm:$0xf]
    %v88 = vld [vmem:[#allocation5 + $0x30] sm:$0xf]
    %v89 = vld [vmem:[#allocation5 + $0x34] sm:$0xf]
    %v90 = vld [vmem:[#allocation5 + $0x38] sm:$0xf]
    %v91 = vld [vmem:[#allocation5 + $0x3c] sm:$0xf]
    %v94 = vunpack.c.l.b16 %v74
    %v95 = vunpack.c.l.b16 %v75
    %v96 = vpack.c.b16 %v95, %v94
    %v114 = vunpack.c.l.b16 %v76
    %v115 = vunpack.c.l.b16 %v77
    %v116 = vunpack.c.l.b16 %v78
    %v117 = vunpack.c.l.b16 %v79
    %v118 = vunpack.c.l.b16 %v80
    %v119 = vunpack.c.l.b16 %v81
    %v120 = vunpack.c.l.b16 %v82
    %v121 = vunpack.c.l.b16 %v83
    %v122 = vunpack.c.l.b16 %v84
    %v123 = vunpack.c.l.b16 %v85
    %v124 = vunpack.c.l.b16 %v86
    %v125 = vunpack.c.l.b16 %v87
    %v126 = vunpack.c.l.b16 %v88
    %v127 = vunpack.c.l.b16 %v89
    %v128 = vunpack.c.l.b16 %v90
    %v129 = vunpack.c.l.b16 %v91
    %v130 = vpack.c.b16 %v115, %v114
    %v131 = vpack.c.b16 %v117, %v116
    %v132 = vpack.c.b16 %v119, %v118
    %v133 = vpack.c.b16 %v121, %v120
    %v134 = vpack.c.b16 %v123, %v122
    %v135 = vpack.c.b16 %v125, %v124
    %v136 = vpack.c.b16 %v127, %v126
    %v137 = vpack.c.b16 %v129, %v128
    %146 = vmatprep.subr.bf16.mxu0 0
    %147 = vmatpush1.bf16.msra.mxu0 %v137
    %148 = vmatprep.subr.bf16.mxu0 0
    %149 = vmatpush1.bf16.msra.mxu0 %v136
    %150 = vmatprep.subr.bf16.mxu0 0
    %151 = vmatpush1.bf16.msra.mxu0 %v135
    %152 = vmatprep.subr.bf16.mxu0 0
    %153 = vmatpush1.bf16.msra.mxu0 %v134
    %154 = vmatprep.subr.bf16.mxu0 0
    %155 = vmatpush1.bf16.msra.mxu0 %v133
    %156 = vmatprep.subr.bf16.mxu0 0
    %157 = vmatpush1.bf16.msra.mxu0 %v132
    %158 = vmatprep.subr.bf16.mxu0 0
    %159 = vmatpush1.bf16.msra.mxu0 %v131
    %160 = vmatprep.subr.bf16.mxu0 0
    %161 = vmatpush1.bf16.msra.mxu0 %v130
    %162 = vmatprep.subr.bf16.mxu0 0
    %163 = vmatpush2.bf16.msra.mxu0 0
    %164 = vmatprep.subr.bf16.mxu0 0
    %165 = vmatpush2.bf16.msra.mxu0 0
    %166 = vmatprep.subr.bf16.mxu0 0
    %167 = vmatpush2.bf16.msra.mxu0 0
    %168 = vmatprep.subr.bf16.mxu0 0
    %169 = vmatpush2.bf16.msra.mxu0 0
    %170 = vmatprep.subr.bf16.mxu0 0
    %171 = vmatpush2.bf16.msra.mxu0 0
    %172 = vmatprep.subr.bf16.mxu0 0
    %173 = vmatpush2.bf16.msra.mxu0 0
    %174 = vmatprep.subr.bf16.mxu0 0
    %175 = vmatpush2.bf16.msra.mxu0 0
    %176 = vmatprep.subr.bf16.mxu0 0
    %177 = vmatpush2.bf16.msra.mxu0 0
    %178 = vmatprep.mubr.bf16.mxu0 0
    %179 = vmatmul.mubr.bf16.gmra.mxu0 %v96
    %v180 = vpop.f32.mrf.mxu0
    %v181 = vadd.f32 0.0, %v180
    %v182 = vpop.f32.mrf.mxu0
    %v183 = vpop.f32.mrf.mxu0
    %v184 = vadd.f32 0.0, %v183
    %v185 = vpop.f32.mrf.mxu0
    %186 = vdwg.mxu0
    %v187 = vpack.c.bf16 %v184, %v181
    %v188 = vmax.bf16 %v187, 0
    %v189 = vld [vmem:[#allocation7] sm:$0xf]
    %v190 = vld [vmem:[#allocation7 + $0x4] sm:$0xf]
    %v191 = vld [vmem:[#allocation7 + $0x8] sm:$0xf]
    %v192 = vld [vmem:[#allocation7 + $0xc] sm:$0xf]
    %v193 = vld [vmem:[#allocation7 + $0x10] sm:$0xf]
    %v194 = vld [vmem:[#allocation7 + $0x14] sm:$0xf]
    %v195 = vld [vmem:[#allocation7 + $0x18] sm:$0xf]
    %v196 = vld [vmem:[#allocation7 + $0x1c] sm:$0xf]
    %v197 = vld [vmem:[#allocation7 + $0x20] sm:$0xf]
    %v198 = vld [vmem:[#allocation7 + $0x24] sm:$0xf]
    %v199 = vld [vmem:[#allocation7 + $0x28] sm:$0xf]
    %v200 = vld [vmem:[#allocation7 + $0x2c] sm:$0xf]
    %v201 = vld [vmem:[#allocation7 + $0x30] sm:$0xf]
    %v202 = vld [vmem:[#allocation7 + $0x34] sm:$0xf]
    %v203 = vld [vmem:[#allocation7 + $0x38] sm:$0xf]
    %v204 = vld [vmem:[#allocation7 + $0x3c] sm:$0xf]
    %v221 = vunpack.c.l.b16 %v189
    %v222 = vunpack.c.l.b16 %v190
    %v223 = vunpack.c.l.b16 %v191
    %v224 = vunpack.c.l.b16 %v192
    %v225 = vunpack.c.l.b16 %v193
    %v226 = vunpack.c.l.b16 %v194
    %v227 = vunpack.c.l.b16 %v195
    %v228 = vunpack.c.l.b16 %v196
    %v229 = vunpack.c.l.b16 %v197
    %v230 = vunpack.c.l.b16 %v198
    %v231 = vunpack.c.l.b16 %v199
    %v232 = vunpack.c.l.b16 %v200
    %v233 = vunpack.c.l.b16 %v201
    %v234 = vunpack.c.l.b16 %v202
    %v235 = vunpack.c.l.b16 %v203
    %v236 = vunpack.c.l.b16 %v204
    %v237 = vpack.c.b16 %v222, %v221
    %v238 = vpack.c.b16 %v224, %v223
    %v239 = vpack.c.b16 %v226, %v225
    %v240 = vpack.c.b16 %v228, %v227
    %v241 = vpack.c.b16 %v230, %v229
    %v242 = vpack.c.b16 %v232, %v231
    %v243 = vpack.c.b16 %v234, %v233
    %v244 = vpack.c.b16 %v236, %v235
    %253 = vmatprep.subr.bf16.mxu0 0
    %254 = vmatpush1.bf16.msra.mxu0 %v244
    %255 = vmatprep.subr.bf16.mxu0 0
    %256 = vmatpush1.bf16.msra.mxu0 %v243
    %257 = vmatprep.subr.bf16.mxu0 0
    %258 = vmatpush1.bf16.msra.mxu0 %v242
    %259 = vmatprep.subr.bf16.mxu0 0
    %260 = vmatpush1.bf16.msra.mxu0 %v241
    %261 = vmatprep.subr.bf16.mxu0 0
    %262 = vmatpush1.bf16.msra.mxu0 %v240
    %263 = vmatprep.subr.bf16.mxu0 0
    %264 = vmatpush1.bf16.msra.mxu0 %v239
    %265 = vmatprep.subr.bf16.mxu0 0
    %266 = vmatpush1.bf16.msra.mxu0 %v238
    %267 = vmatprep.subr.bf16.mxu0 0
    %268 = vmatpush1.bf16.msra.mxu0 %v237
    %269 = vmatprep.subr.bf16.mxu0 0
    %270 = vmatpush2.bf16.msra.mxu0 0
    %271 = vmatprep.subr.bf16.mxu0 0
    %272 = vmatpush2.bf16.msra.mxu0 0
    %273 = vmatprep.subr.bf16.mxu0 0
    %274 = vmatpush2.bf16.msra.mxu0 0
    %275 = vmatprep.subr.bf16.mxu0 0
    %276 = vmatpush2.bf16.msra.mxu0 0
    %277 = vmatprep.subr.bf16.mxu0 0
    %278 = vmatpush2.bf16.msra.mxu0 0
    %279 = vmatprep.subr.bf16.mxu0 0
    %280 = vmatpush2.bf16.msra.mxu0 0
    %281 = vmatprep.subr.bf16.mxu0 0
    %282 = vmatpush2.bf16.msra.mxu0 0
    %283 = vmatprep.subr.bf16.mxu0 0
    %284 = vmatpush2.bf16.msra.mxu0 0
    %285 = vmatprep.mubr.bf16.mxu0 0
    %286 = vmatmul.mubr.bf16.gmra.mxu0 %v188
    %v287 = vpop.f32.mrf.mxu0
    %v288 = vadd.f32 0.0, %v287
    %v289 = vpop.f32.mrf.mxu0
    %v290 = vpop.f32.mrf.mxu0
    %v291 = vadd.f32 0.0, %v290
    %v292 = vpop.f32.mrf.mxu0
    %293 = vdwg.mxu0
    %v294 = vpack.c.bf16 %v291, %v288
    %v295 = vmax.bf16 %v294, 0
    %v296 = vld [vmem:[#allocation8] sm:$0xf]
    %v297 = vld [vmem:[#allocation8 + $0x4] sm:$0xf]
    %v298 = vld [vmem:[#allocation8 + $0x8] sm:$0xf]
    %v299 = vld [vmem:[#allocation8 + $0xc] sm:$0xf]
    %v300 = vld [vmem:[#allocation8 + $0x10] sm:$0xf]
    %v301 = vld [vmem:[#allocation8 + $0x14] sm:$0xf]
    %v302 = vld [vmem:[#allocation8 + $0x18] sm:$0xf]
    %v303 = vld [vmem:[#allocation8 + $0x1c] sm:$0xf]
    %v304 = vld [vmem:[#allocation8 + $0x20] sm:$0xf]
    %v305 = vld [vmem:[#allocation8 + $0x24] sm:$0xf]
    %v306 = vld [vmem:[#allocation8 + $0x28] sm:$0xf]
    %v307 = vld [vmem:[#allocation8 + $0x2c] sm:$0xf]
    %v308 = vld [vmem:[#allocation8 + $0x30] sm:$0xf]
    %v309 = vld [vmem:[#allocation8 + $0x34] sm:$0xf]
    %v310 = vld [vmem:[#allocation8 + $0x38] sm:$0xf]
    %v311 = vld [vmem:[#allocation8 + $0x3c] sm:$0xf]
    %v328 = vunpack.c.l.b16 %v296
    %v329 = vunpack.c.l.b16 %v297
    %v330 = vunpack.c.l.b16 %v298
    %v331 = vunpack.c.l.b16 %v299
    %v332 = vunpack.c.l.b16 %v300
    %v333 = vunpack.c.l.b16 %v301
    %v334 = vunpack.c.l.b16 %v302
    %v335 = vunpack.c.l.b16 %v303
    %v336 = vunpack.c.l.b16 %v304
    %v337 = vunpack.c.l.b16 %v305
    %v338 = vunpack.c.l.b16 %v306
    %v339 = vunpack.c.l.b16 %v307
    %v340 = vunpack.c.l.b16 %v308
    %v341 = vunpack.c.l.b16 %v309
    %v342 = vunpack.c.l.b16 %v310
    %v343 = vunpack.c.l.b16 %v311
    %v344 = vpack.c.b16 %v329, %v328
    %v345 = vpack.c.b16 %v331, %v330
    %v346 = vpack.c.b16 %v333, %v332
    %v347 = vpack.c.b16 %v335, %v334
    %v348 = vpack.c.b16 %v337, %v336
    %v349 = vpack.c.b16 %v339, %v338
    %v350 = vpack.c.b16 %v341, %v340
    %v351 = vpack.c.b16 %v343, %v342
    %360 = vmatprep.subr.bf16.mxu0 0
    %361 = vmatpush1.bf16.msra.mxu0 %v351
    %362 = vmatprep.subr.bf16.mxu0 0
    %363 = vmatpush1.bf16.msra.mxu0 %v350
    %364 = vmatprep.subr.bf16.mxu0 0
    %365 = vmatpush1.bf16.msra.mxu0 %v349
    %366 = vmatprep.subr.bf16.mxu0 0
    %367 = vmatpush1.bf16.msra.mxu0 %v348
    %368 = vmatprep.subr.bf16.mxu0 0
    %369 = vmatpush1.bf16.msra.mxu0 %v347
    %370 = vmatprep.subr.bf16.mxu0 0
    %371 = vmatpush1.bf16.msra.mxu0 %v346
    %372 = vmatprep.subr.bf16.mxu0 0
    %373 = vmatpush1.bf16.msra.mxu0 %v345
    %374 = vmatprep.subr.bf16.mxu0 0
    %375 = vmatpush1.bf16.msra.mxu0 %v344
    %376 = vmatprep.subr.bf16.mxu0 0
    %377 = vmatpush2.bf16.msra.mxu0 0
    %378 = vmatprep.subr.bf16.mxu0 0
    %379 = vmatpush2.bf16.msra.mxu0 0
    %380 = vmatprep.subr.bf16.mxu0 0
    %381 = vmatpush2.bf16.msra.mxu0 0
    %382 = vmatprep.subr.bf16.mxu0 0
    %383 = vmatpush2.bf16.msra.mxu0 0
    %384 = vmatprep.subr.bf16.mxu0 0
    %385 = vmatpush2.bf16.msra.mxu0 0
    %386 = vmatprep.subr.bf16.mxu0 0
    %387 = vmatpush2.bf16.msra.mxu0 0
    %388 = vmatprep.subr.bf16.mxu0 0
    %389 = vmatpush2.bf16.msra.mxu0 0
    %390 = vmatprep.subr.bf16.mxu0 0
    %391 = vmatpush2.bf16.msra.mxu0 0
    %392 = vmatprep.mubr.bf16.mxu0 0
    %393 = vmatmul.mubr.bf16.gmra.mxu0 %v295
    %v394 = vpop.f32.mrf.mxu0
    %v395 = vadd.f32 0.0, %v394
    %v396 = vpop.f32.mrf.mxu0
    %v397 = vpop.f32.mrf.mxu0
    %v398 = vadd.f32 0.0, %v397
    %v399 = vpop.f32.mrf.mxu0
    %400 = vdwg.mxu0
    %401 = vst [vmem:[#allocation10] sm:$0xff] %v395
    %402 = vst [vmem:[#allocation10 + $0x8] sm:$0xff] %v398
    // Predicated region
    $region34: #{tpu_custom_call.1} parent=1 // pred_check
      _
    $region35: #{tpu_custom_call.1} parent=1 // pred_check_branch
      %404 = sbr.rel (0) target = $region37
    $region36: #{tpu_custom_call.1} parent=1 // pred_region
      %s406 = ssub.s32 256, 256
      %407 = vsyncadd [#allocation4], %s406
      %s408 = sshll.u32 [#allocation10], 4
      %s409 = int_to_ptr.vmem [resolvable:$true] %s408
      %414 = dma.vmem_to_hbm [thread:$0]  %s409, 256, %s4, [#allocation4], 128, 128, 8
    $region37: #{tpu_custom_call.1} parent=1 // pred_fallthru
      _
    // Predicated region
    $region38: #{tpu_custom_call.1} parent=1 // pred_check
      _
    $region39: #{tpu_custom_call.1} parent=1 // pred_check_branch
      %416 = sbr.rel (0) target = $region41
    $region40: #{tpu_custom_call.1} parent=1 // pred_region
      %417 = dma.done [#allocation4], 256
    $region41: #{tpu_custom_call.1} parent=1 // pred_fallthru
      _
    %418 = vsyncpa [#allocation3], 1
    %419 = vsyncpa [#allocation6], 1
    %420 = vsyncpa [#allocation9], 1
    %421 = vsyncpa [#allocation4], 1

</llo_original>
